<compile_context>
chip_gen: v7x
topology: tpu7x:2x2x1
jax: 0.10.0
libtpu: 0.0.40
codegen_flags: <defaults>
</compile_context>

<pallas_src>
import functools

import jax
import jax.numpy as jnp
from jax import lax
from jax.experimental import pallas as pl
from jax.experimental.pallas import tpu as pltpu

BN_EPS = 1e-5


def _non_local_kernel(x_ref, w_all_ref, b_all_ref, wW_ref, bW_ref, out_ref,
                      *, bt, ic, n_valid, n_pad):
    """One grid step == `bt` batch elements, (C, N) channels-first layout.

    x_ref / out_ref blocks: (bt, C, N_pad); parameters are whole tiny VMEM refs.
    """
    padded = n_pad != n_valid
    if padded:
        lane = lax.broadcasted_iota(jnp.int32, (1, n_pad), 1)
        lane_mask = lane < n_valid
    inv_n = 1.0 / float(n_valid)

    w_all = w_all_ref[...]            # (3IC, C)  activation dtype
    b_all = b_all_ref[...]            # (3IC, 1)  f32
    wW = wW_ref[...]                  # (C, IC)   activation dtype (BN folded)
    bW = bW_ref[...]                  # (C, 1)    f32 (BN folded)

    for b in range(bt):               # static unroll over the batch block
        xb = x_ref[b]                 # (C, N) native dtype -- no upcast pass

        # theta / phi / g 1x1 convs fused into one matmul, f32 accumulation.
        proj = jnp.dot(w_all, xb,
                       preferred_element_type=jnp.float32) + b_all   # (3IC, N)
        if padded:
            # Zero padded lanes so they do not contaminate the Gram reduction
            # (bias makes them nonzero even though the padded x columns are 0).
            proj = jnp.where(lane_mask, proj, 0.0)

        # One tiny Gram over N: st_all[a, b] = sum_n proj[a, n] * proj[b, n].
        st_all = lax.dot_general(proj, proj, (((1,), (1,)), ((), ())),
                                 preferred_element_type=jnp.float32)  # (3IC,3IC)
        # st = (g . phi^T) / N  ==  s^T  with the 1/N folded into IC^2 values.
        st = st_all[2 * ic:3 * ic, ic:2 * ic] * inv_n                  # (IC, IC)
        theta = proj[0:ic]                                             # (IC, N)

        if ic == 1:
            # Degenerate K=1 matmuls -> VPU broadcast multiplies (MXU stays idle
            # anyway for K=1; this avoids push/pop + layout shuffles).
            u = wW.astype(jnp.float32) * st          # (C, 1) * (1, 1) -> (C, 1)
            wy = u * theta                           # (C, 1) * (1, N) -> (C, N)
        else:
            u = jnp.dot(wW.astype(jnp.float32), st,
                        preferred_element_type=jnp.float32)            # (C, IC)
            wy = jnp.dot(u, theta, preferred_element_type=jnp.float32)  # (C, N)

        # W-conv bias + folded BN shift + residual, fused into the store.
        out_ref[b] = (wy + bW + xb).astype(out_ref.dtype)


def _pick_block_batch(batch, per_batch_bytes):
    """Batch elements per grid step: amortize ~0.35us/step overhead for tiny
    blocks, cap the block so double-buffering fits v7x's 64 MiB VMEM, and keep
    >= 2 grid steps (megacore) once per-batch blocks are big enough."""
    target = 8 << 20
    best = 1
    for cand in range(1, batch + 1):
        if batch % cand == 0 and cand * per_batch_bytes <= target:
            best = cand
    if batch >= 2 and best == batch and per_batch_bytes >= (512 << 10):
        for cand in range(batch // 2, 0, -1):
            if batch % cand == 0:
                best = cand
                break
    return best


def non_local_pallas(x_nchw, params):
    B, C, H, W = x_nchw.shape
    N = H * W
    IC = params["w_theta"].shape[0]
    act_dtype = x_nchw.dtype
    itemsize = jnp.dtype(act_dtype).itemsize

    # NCHW -> (B, C, N): pure reshape, no HBM transpose, keeps activation dtype.
    x = x_nchw.reshape(B, C, N)

    # Pad the pixel axis to a multiple of 128 so stores lower to unmasked,
    # lane-dense vst.  Padded columns are zero; the kernel masks them out of
    # the Gram and uses the true N for the 1/N scale.
    N_pad = -(-N // 128) * 128
    if N_pad != N:
        x = jnp.pad(x, ((0, 0), (0, 0), (0, N_pad - N)))

    # Fold BatchNorm (eval mode, running stats) into the W 1x1 conv (in f32),
    # then cast the matmul weights to the activation dtype (bf16-native MXU).
    gamma = params["bn_gamma"].reshape(C).astype(jnp.float32)
    beta = params["bn_beta"].reshape(C).astype(jnp.float32)
    mean = params["bn_mean"].reshape(C).astype(jnp.float32)
    var = params["bn_var"].reshape(C).astype(jnp.float32)
    a = gamma * lax.rsqrt(var + BN_EPS)
    w_Wf = (params["w_W"].astype(jnp.float32) * a[:, None]).astype(act_dtype)  # (C, IC)
    b_Wf = ((params["b_W"].reshape(C).astype(jnp.float32) - mean) * a
            + beta).reshape(C, 1)                                               # (C, 1) f32

    # Stack theta / phi / g projection weights & biases (one matmul in-kernel).
    w_all = jnp.concatenate(
        [params["w_theta"], params["w_phi"], params["w_g"]],
        axis=0).astype(act_dtype)                                               # (3IC, C)
    b_all = jnp.concatenate(
        [params["b_theta"].reshape(IC), params["b_phi"].reshape(IC),
         params["b_g"].reshape(IC)]).astype(jnp.float32).reshape(3 * IC, 1)

    # Batch blocking.
    per_batch_bytes = C * N_pad * itemsize
    Bt = _pick_block_batch(B, per_batch_bytes)
    grid = (B // Bt,)

    # Roofline-style cost hint: the kernel is HBM-bandwidth bound.
    cost = pl.CostEstimate(
        flops=int(B * N * C * (8 * IC + 2)),
        transcendentals=0,
        bytes_accessed=int(2 * B * C * N_pad * itemsize))

    # Explicit VMEM budget (double-buffered in/out blocks + f32 temporaries),
    # clamped so it stays within v7x's 64 MiB physical VMEM.
    block_bytes = Bt * per_batch_bytes
    temp_bytes = 2 * (3 * IC + C) * N_pad * 4
    param_bytes = 2 * (3 * IC * C + 3 * IC + C * IC + C) * 4
    vmem_est = 4 * block_bytes + temp_bytes + param_bytes + (2 << 20)
    vmem_limit = int(min(64 << 20, max(32 << 20, vmem_est)))

    def full_spec(shape):
        # Whole (tiny) parameter array resident in VMEM every grid step.
        return pl.BlockSpec(shape, lambda i, _n=len(shape): (0,) * _n)

    kernel = functools.partial(_non_local_kernel, bt=Bt, ic=IC,
                               n_valid=N, n_pad=N_pad)
    out = pl.pallas_call(
        kernel,
        out_shape=jax.ShapeDtypeStruct((B, C, N_pad), act_dtype),
        grid_spec=pltpu.PrefetchScalarGridSpec(
            num_scalar_prefetch=0,
            grid=grid,
            in_specs=[
                pl.BlockSpec((Bt, C, N_pad), lambda i: (i, 0, 0)),  # x (lane-dense)
                full_spec((3 * IC, C)),                             # stacked proj W
                full_spec((3 * IC, 1)),                             # stacked proj b
                full_spec((C, IC)),                                 # BN-folded W weight
                full_spec((C, 1)),                                  # BN-folded W bias
            ],
            out_specs=pl.BlockSpec((Bt, C, N_pad), lambda i: (i, 0, 0)),
        ),
        compiler_params=pltpu.CompilerParams(
            dimension_semantics=("parallel",),
            vmem_limit_bytes=vmem_limit),
        cost_estimate=cost,
    )(x, w_all, b_all, w_Wf, b_Wf)

    if N_pad != N:
        out = out[:, :, :N]
    return out.reshape(B, C, H, W)


def non_local_ref(x_nchw, params):
    """Pure-JAX reference matching the PyTorch forward literally (BN eval mode)."""
    B, C, H, W = x_nchw.shape
    N = H * W
    x = x_nchw.reshape(B, C, N).astype(jnp.float32)

    def conv1x1(w, b):  # w: (O, C), b: (1, O) or (O,) -> (B, O, N)
        return jnp.einsum("oc,bcn->bon", w, x) + b.reshape(1, -1, 1)

    theta = conv1x1(params["w_theta"], params["b_theta"])
    phi = conv1x1(params["w_phi"], params["b_phi"])
    g = conv1x1(params["w_g"], params["b_g"])
    f = jnp.einsum("bin,bim->bnm", theta, phi) / N           # (B, N, N)
    y = jnp.einsum("bnm,bim->bin", f, g)                     # (B, IC, N)
    wy = (jnp.einsum("ci,bin->bcn", params["w_W"], y)
          + params["b_W"].reshape(1, C, 1))
    bn = ((wy - params["bn_mean"].reshape(1, C, 1))
          / jnp.sqrt(params["bn_var"].reshape(1, C, 1) + BN_EPS)
          * params["bn_gamma"].reshape(1, C, 1)
          + params["bn_beta"].reshape(1, C, 1))
    z = bn + x
    return z.reshape(B, C, H, W).astype(x_nchw.dtype)


if __name__ == "__main__":
    B, C, H, W = 2, 4, 16, 16            # x: (b, c, h, w) NCHW, as in the module
    IC = 1                               # inter_channels = reduc_ratio // reduc_ratio == 1

    key = jax.random.PRNGKey(0)
    keys = jax.random.split(key, 11)
    x = jax.random.normal(keys[0], (B, C, H, W), jnp.float32)

    # Deterministic synthetic parameters (shapes follow the module's __init__).
    params = dict(
        w_g=jax.random.normal(keys[1], (IC, C), jnp.float32) * 0.1,
        b_g=jax.random.normal(keys[2], (1, IC), jnp.float32) * 0.1,
        w_theta=jax.random.normal(keys[3], (IC, C), jnp.float32) * 0.1,
        b_theta=jax.random.normal(keys[4], (1, IC), jnp.float32) * 0.1,
        w_phi=jax.random.normal(keys[5], (IC, C), jnp.float32) * 0.1,
        b_phi=jax.random.normal(keys[6], (1, IC), jnp.float32) * 0.1,
        w_W=jax.random.normal(keys[7], (C, IC), jnp.float32) * 0.1,
        b_W=jax.random.normal(keys[8], (1, C), jnp.float32) * 0.1,
        # BatchNorm per the module: weight=0, bias=0, running stats at defaults
        # (mean=0, var=1); BN applied in eval mode.
        bn_gamma=jnp.zeros((1, C), jnp.float32),
        bn_beta=jnp.zeros((1, C), jnp.float32),
        bn_mean=jnp.zeros((1, C), jnp.float32),
        bn_var=jnp.ones((1, C), jnp.float32),
    )

    out = jax.block_until_ready(non_local_pallas(x, params))
    ref = non_local_ref(x, params)
    assert out.shape == x.shape and out.dtype == x.dtype
    # Reassociated math changes FP summation order slightly vs. the literal graph.
    assert jnp.allclose(out, ref, atol=1e-4, rtol=1e-4)

    # Nonzero BN params so the full W branch (and the BN fold) is exercised
    # (the module's init makes the W branch output exactly zero).
    params2 = dict(params,
                   bn_gamma=jnp.full((1, C), 0.5, jnp.float32),
                   bn_beta=jnp.full((1, C), -0.25, jnp.float32),
                   bn_mean=jax.random.normal(keys[9], (1, C), jnp.float32) * 0.1,
                   bn_var=jnp.full((1, C), 2.0, jnp.float32))
    out2 = jax.block_until_ready(non_local_pallas(x, params2))
    assert jnp.allclose(out2, non_local_ref(x, params2), atol=1e-4, rtol=1e-4)

    # Non-128-multiple pixel count exercises the padded / lane-masked path.
    x3 = jax.random.normal(keys[10], (B, C, 10, 10), jnp.float32)
    out3 = jax.block_until_ready(non_local_pallas(x3, params2))
    assert jnp.allclose(out3, non_local_ref(x3, params2), atol=1e-4, rtol=1e-4)

    # bf16 activations take the no-upcast / bf16-weight path end-to-end.
    x_bf = x.astype(jnp.bfloat16)
    out_bf = jax.block_until_ready(non_local_pallas(x_bf, params2))
    assert out_bf.dtype == jnp.bfloat16
    ref_bf = non_local_ref(x_bf.astype(jnp.float32), params2)
    assert jnp.allclose(out_bf.astype(jnp.float32), ref_bf, atol=1e-1, rtol=5e-2)

    print("KERNEL_OK")
</pallas_src>

<mosaic_0001>
module attributes {stable_mosaic.version = 11 : i64} {
  func.func @_non_local_kernel(%arg0: i32, %arg1: memref<2x4x256xf32, #tpu.memory_space<vmem>>, %arg2: memref<3x4xf32, #tpu.memory_space<vmem>>, %arg3: memref<3x1xf32, #tpu.memory_space<vmem>>, %arg4: memref<4x1xf32, #tpu.memory_space<vmem>>, %arg5: memref<4x1xf32, #tpu.memory_space<vmem>>, %arg6: memref<2x4x256xf32, #tpu.memory_space<vmem>>) attributes {dimension_semantics = [#tpu.dimension_semantics<parallel>], iteration_bounds = array<i64: 1>, scalar_prefetch = 0 : i64, scratch_operands = 0 : i64, tpu.core_type = #tpu.core_type<tc>, window_params = [{transform_indices = @transform_0, window_bounds = array<i64: 2, 4, 256>}, {pipeline_mode = #tpu.pipeline_mode<synchronous>, transform_indices = @transform_1, window_bounds = array<i64: 3, 4>}, {pipeline_mode = #tpu.pipeline_mode<synchronous>, transform_indices = @transform_2, window_bounds = array<i64: 3, 1>}, {pipeline_mode = #tpu.pipeline_mode<synchronous>, transform_indices = @transform_3, window_bounds = array<i64: 4, 1>}, {pipeline_mode = #tpu.pipeline_mode<synchronous>, transform_indices = @transform_4, window_bounds = array<i64: 4, 1>}, {transform_indices = @transform_5, window_bounds = array<i64: 2, 4, 256>}]} {
    %c0 = arith.constant 0 : index
    %c0_0 = arith.constant 0 : index
    %0 = vector.load %arg2[%c0, %c0_0] : memref<3x4xf32, #tpu.memory_space<vmem>>, vector<3x4xf32>
    %c0_1 = arith.constant 0 : index
    %c0_2 = arith.constant 0 : index
    %1 = vector.load %arg3[%c0_1, %c0_2] : memref<3x1xf32, #tpu.memory_space<vmem>>, vector<3x1xf32>
    %c0_3 = arith.constant 0 : index
    %c0_4 = arith.constant 0 : index
    %2 = vector.load %arg4[%c0_3, %c0_4] : memref<4x1xf32, #tpu.memory_space<vmem>>, vector<4x1xf32>
    %c0_5 = arith.constant 0 : index
    %c0_6 = arith.constant 0 : index
    %3 = vector.load %arg5[%c0_5, %c0_6] : memref<4x1xf32, #tpu.memory_space<vmem>>, vector<4x1xf32>
    %c0_7 = arith.constant 0 : index
    %c0_8 = arith.constant 0 : index
    %c0_9 = arith.constant 0 : index
    %4 = vector.load %arg1[%c0_7, %c0_8, %c0_9] : memref<2x4x256xf32, #tpu.memory_space<vmem>>, vector<1x4x256xf32>
    %5 = vector.shape_cast %4 : vector<1x4x256xf32> to vector<4x256xf32>
    %cst = arith.constant dense<0.000000e+00> : vector<3x256xf32>
    %6 = tpu.matmul %0, %5, %cst {dimension_numbers = #tpu.dot_dimension_numbers<[1], [0], [0], [1], [0, 0, 1, 1], [], []>} : vector<3x4xf32>, vector<4x256xf32>, vector<3x256xf32> -> vector<3x256xf32>
    %7 = vector.broadcast %1 : vector<3x1xf32> to vector<3x256xf32>
    %8 = arith.addf %6, %7 : vector<3x256xf32>
    %cst_10 = arith.constant dense<0.000000e+00> : vector<3x3xf32>
    %9 = tpu.matmul %8, %8, %cst_10 {dimension_numbers = #tpu.dot_dimension_numbers<[1], [1], [0], [0], [0, 0, 1, 0], [], []>} : vector<3x256xf32>, vector<3x256xf32>, vector<3x3xf32> -> vector<3x3xf32>
    %10 = vector.extract_strided_slice %9 {offsets = [2, 1], sizes = [1, 1], strides = [1, 1]} : vector<3x3xf32> to vector<1x1xf32>
    %cst_11 = arith.constant 3.906250e-03 : f32
    %11 = vector.broadcast %cst_11 : f32 to vector<1x1xf32>
    %12 = arith.mulf %10, %11 : vector<1x1xf32>
    %13 = vector.extract_strided_slice %8 {offsets = [0, 0], sizes = [1, 256], strides = [1, 1]} : vector<3x256xf32> to vector<1x256xf32>
    %14 = vector.broadcast %12 : vector<1x1xf32> to vector<4x1xf32>
    %15 = arith.mulf %2, %14 : vector<4x1xf32>
    %16 = vector.broadcast %15 : vector<4x1xf32> to vector<4x256xf32>
    %17 = vector.broadcast %13 : vector<1x256xf32> to vector<4x256xf32>
    %18 = arith.mulf %16, %17 : vector<4x256xf32>
    %19 = vector.broadcast %3 : vector<4x1xf32> to vector<4x256xf32>
    %20 = arith.addf %18, %19 : vector<4x256xf32>
    %21 = arith.addf %20, %5 : vector<4x256xf32>
    %c0_12 = arith.constant 0 : index
    %c0_13 = arith.constant 0 : index
    %c0_14 = arith.constant 0 : index
    %22 = vector.load %arg6[%c0_12, %c0_13, %c0_14] : memref<2x4x256xf32, #tpu.memory_space<vmem>>, vector<1x4x256xf32>
    %23 = vector.shape_cast %22 : vector<1x4x256xf32> to vector<4x256xf32>
    %24 = vector.shape_cast %21 : vector<4x256xf32> to vector<1x4x256xf32>
    tpu.vector_store %arg6[%c0_12, %c0_13, %c0_14], %24 {strides = array<i32>} : memref<2x4x256xf32, #tpu.memory_space<vmem>>, vector<1x4x256xf32>,
    %c1 = arith.constant 1 : index
    %c0_15 = arith.constant 0 : index
    %c0_16 = arith.constant 0 : index
    %25 = vector.load %arg1[%c1, %c0_15, %c0_16] : memref<2x4x256xf32, #tpu.memory_space<vmem>>, vector<1x4x256xf32>
    %26 = vector.shape_cast %25 : vector<1x4x256xf32> to vector<4x256xf32>
    %cst_17 = arith.constant dense<0.000000e+00> : vector<3x256xf32>
    %27 = tpu.matmul %0, %26, %cst_17 {dimension_numbers = #tpu.dot_dimension_numbers<[1], [0], [0], [1], [0, 0, 1, 1], [], []>} : vector<3x4xf32>, vector<4x256xf32>, vector<3x256xf32> -> vector<3x256xf32>
    %28 = vector.broadcast %1 : vector<3x1xf32> to vector<3x256xf32>
    %29 = arith.addf %27, %28 : vector<3x256xf32>
    %cst_18 = arith.constant dense<0.000000e+00> : vector<3x3xf32>
    %30 = tpu.matmul %29, %29, %cst_18 {dimension_numbers = #tpu.dot_dimension_numbers<[1], [1], [0], [0], [0, 0, 1, 0], [], []>} : vector<3x256xf32>, vector<3x256xf32>, vector<3x3xf32> -> vector<3x3xf32>
    %31 = vector.extract_strided_slice %30 {offsets = [2, 1], sizes = [1, 1], strides = [1, 1]} : vector<3x3xf32> to vector<1x1xf32>
    %cst_19 = arith.constant 3.906250e-03 : f32
    %32 = vector.broadcast %cst_19 : f32 to vector<1x1xf32>
    %33 = arith.mulf %31, %32 : vector<1x1xf32>
    %34 = vector.extract_strided_slice %29 {offsets = [0, 0], sizes = [1, 256], strides = [1, 1]} : vector<3x256xf32> to vector<1x256xf32>
    %35 = vector.broadcast %33 : vector<1x1xf32> to vector<4x1xf32>
    %36 = arith.mulf %2, %35 : vector<4x1xf32>
    %37 = vector.broadcast %36 : vector<4x1xf32> to vector<4x256xf32>
    %38 = vector.broadcast %34 : vector<1x256xf32> to vector<4x256xf32>
    %39 = arith.mulf %37, %38 : vector<4x256xf32>
    %40 = vector.broadcast %3 : vector<4x1xf32> to vector<4x256xf32>
    %41 = arith.addf %39, %40 : vector<4x256xf32>
    %42 = arith.addf %41, %26 : vector<4x256xf32>
    %c1_20 = arith.constant 1 : index
    %c0_21 = arith.constant 0 : index
    %c0_22 = arith.constant 0 : index
    %43 = vector.load %arg6[%c1_20, %c0_21, %c0_22] : memref<2x4x256xf32, #tpu.memory_space<vmem>>, vector<1x4x256xf32>
    %44 = vector.shape_cast %43 : vector<1x4x256xf32> to vector<4x256xf32>
    %45 = vector.shape_cast %42 : vector<4x256xf32> to vector<1x4x256xf32>
    tpu.vector_store %arg6[%c1_20, %c0_21, %c0_22], %45 {strides = array<i32>} : memref<2x4x256xf32, #tpu.memory_space<vmem>>, vector<1x4x256xf32>,
    return
  }
  func.func @transform_0(%arg0: i32) -> (i32, i32, i32) {
    %c0_i32 = arith.constant 0 : i32
    %c0_i32_0 = arith.constant 0 : i32
    %c0_i32_1 = arith.constant 0 : i32
    return %arg0, %c0_i32, %c0_i32_0 : i32, i32, i32
  }
  func.func @transform_1(%arg0: i32) -> (i32, i32) {
    %c0_i32 = arith.constant 0 : i32
    %c0_i32_0 = arith.constant 0 : i32
    %c0_i32_1 = arith.constant 0 : i32
    return %c0_i32, %c0_i32_0 : i32, i32
  }
  func.func @transform_2(%arg0: i32) -> (i32, i32) {
    %c0_i32 = arith.constant 0 : i32
    %c0_i32_0 = arith.constant 0 : i32
    %c0_i32_1 = arith.constant 0 : i32
    return %c0_i32, %c0_i32_0 : i32, i32
  }
  func.func @transform_3(%arg0: i32) -> (i32, i32) {
    %c0_i32 = arith.constant 0 : i32
    %c0_i32_0 = arith.constant 0 : i32
    %c0_i32_1 = arith.constant 0 : i32
    return %c0_i32, %c0_i32_0 : i32, i32
  }
  func.func @transform_4(%arg0: i32) -> (i32, i32) {
    %c0_i32 = arith.constant 0 : i32
    %c0_i32_0 = arith.constant 0 : i32
    %c0_i32_1 = arith.constant 0 : i32
    return %c0_i32, %c0_i32_0 : i32, i32
  }
  func.func @transform_5(%arg0: i32) -> (i32, i32, i32) {
    %c0_i32 = arith.constant 0 : i32
    %c0_i32_0 = arith.constant 0 : i32
    %c0_i32_1 = arith.constant 0 : i32
    return %arg0, %c0_i32, %c0_i32_0 : i32, i32, i32
  }
}

</mosaic_0001>

<llo_original>
// kernel: tpu_custom_call.1
$region0: #{tpu_custom_call.1}
  #allocation0 [shape = 'u32[]', space=smem, size = 0x4, offset = 0x4, fixed_abs, tag = 'smem constant byte address 0x4 - core index']
  #allocation1 [shape = 'u32[144,128]{1,0:T(1,128)}', space=vmem, size = 0x12000, scoped, tag = 'internal scratch']
  %s0 = inlined_call_operand.hbm [shape: f32[2,4,256], index: 0, kind: input, shape index: {}]
  %s1 = inlined_call_operand.vmem [shape: f32[3,4], index: 1, kind: input, shape index: {}]
  %s2 = inlined_call_operand.vmem [shape: f32[3,1], index: 2, kind: input, shape index: {}]
  %s3 = inlined_call_operand.vmem [shape: f32[4,1], index: 3, kind: input, shape index: {}]
  %s4 = inlined_call_operand.vmem [shape: f32[4,1], index: 4, kind: input, shape index: {}]
  %s5 = inlined_call_operand.hbm [shape: f32[2,4,256], index: 5, kind: output, shape index: {}]
  %s6 = sld [smem:[#allocation0]]
  $region34: #{tpu_custom_call.1} parent=0
    _
  %s8 = ssub.s32 1, %s6
  %s9 = scalar_select 0, %s8, %s6
  $region1: #{tpu_custom_call.1} parent=0
    #allocation2 [shape = 'u8[8192]{0}', space=vmem, size = 0x2000, scoped, tag = 'input window, operand 0, single buffered']
    #allocation3 [shape = 's32[1]{0}', space=sflag, size = 0x4, scoped, tag = 'scoped memory for tpu_custom_call.1']
    #allocation4 [shape = 's32[1]{0}', space=sflag, size = 0x4, scoped, tag = 'scoped memory for tpu_custom_call.1']
    #allocation5 [shape = 'u8[8192]{0}', space=vmem, size = 0x2000, scoped, tag = 'output window, operand 0, single buffered']
    %10 = vsyncpa [#allocation3], 0
    %11 = vsyncpa [#allocation4], 0
    // Predicated region
    $region2: #{tpu_custom_call.1} parent=1 // pred_check
      _
    $region3: #{tpu_custom_call.1} parent=1 // pred_check_branch
      %13 = sbr.rel (0) target = $region5
    $region4: #{tpu_custom_call.1} parent=1 // pred_region
      %s15 = ssub.s32 256, 256
      %16 = vsyncadd [#allocation3], %s15
      %s17 = sshll.u32 [#allocation2], 4
      %s18 = int_to_ptr.vmem [resolvable:$true] %s17
      %23 = dma.hbm_to_vmem [thread:$0]  %s0, 256, %s18, [#allocation3], 128, 128, 8
    $region5: #{tpu_custom_call.1} parent=1 // pred_fallthru
      _
    // Predicated region
    $region6: #{tpu_custom_call.1} parent=1 // pred_check
      _
    $region7: #{tpu_custom_call.1} parent=1 // pred_check_branch
      %25 = sbr.rel (0) target = $region9
    $region8: #{tpu_custom_call.1} parent=1 // pred_region
      _
    $region9: #{tpu_custom_call.1} parent=1 // pred_fallthru
      _
    // Predicated region
    $region10: #{tpu_custom_call.1} parent=1 // pred_check
      _
    $region11: #{tpu_custom_call.1} parent=1 // pred_check_branch
      %27 = sbr.rel (0) target = $region13
    $region12: #{tpu_custom_call.1} parent=1 // pred_region
      _
    $region13: #{tpu_custom_call.1} parent=1 // pred_fallthru
      _
    // Predicated region
    $region14: #{tpu_custom_call.1} parent=1 // pred_check
      _
    $region15: #{tpu_custom_call.1} parent=1 // pred_check_branch
      %29 = sbr.rel (0) target = $region17
    $region16: #{tpu_custom_call.1} parent=1 // pred_region
      _
    $region17: #{tpu_custom_call.1} parent=1 // pred_fallthru
      _
    // Predicated region
    $region18: #{tpu_custom_call.1} parent=1 // pred_check
      _
    $region19: #{tpu_custom_call.1} parent=1 // pred_check_branch
      %31 = sbr.rel (0) target = $region21
    $region20: #{tpu_custom_call.1} parent=1 // pred_region
      _
    $region21: #{tpu_custom_call.1} parent=1 // pred_fallthru
      _
    // Predicated region
    $region22: #{tpu_custom_call.1} parent=1 // pred_check
      _
    $region23: #{tpu_custom_call.1} parent=1 // pred_check_branch
      %33 = sbr.rel (0) target = $region25
    $region24: #{tpu_custom_call.1} parent=1 // pred_region
      %34 = dma.done [#allocation3], 256
    $region25: #{tpu_custom_call.1} parent=1 // pred_fallthru
      _
    %v35 = vld [vmem:[%s1] sm:$0x7]
    %v36 = vld [vmem:[%s2] sm:$0x7]
    %v37 = vld [vmem:[%s3] sm:$0xf]
    %v38 = vld [vmem:[%s4] sm:$0xf]
    %v39 = vld [vmem:[#allocation2] sm:$0xff]
    %41 = vset.pattern.permute.xlu0 0
    %42 = vperm.xlu0 %41, %v36
    %v43 = vpop.permute.xlu0 %42
    %v46 = vcombine.high %v39, %v39
    %vm47 = vcmask 31744
    %v49 = vsel %vm47, %v35, 0
    %vm51 = vcmask 1043456
    %v52 = vsel %vm51, %v39, 0
    %v54 = vsel %vm51, %v46, 0
    %56 = vmatprep.subr.mxu0 %v54
    %57 = vmatpush1.msra.mxu0 %v52
    %58 = vmatprep.subr.mxu0 0.0
    %59 = vmatpush1.msra.mxu0 0.0
    %60 = vmatprep.subr.mxu0 0.0
    %61 = vmatpush1.msra.mxu0 0.0
    %62 = vmatprep.subr.mxu0 0.0
    %63 = vmatpush1.msra.mxu0 0.0
    %64 = vmatprep.subr.mxu0 0.0
    %65 = vmatpush1.msra.mxu0 0.0
    %66 = vmatprep.subr.mxu0 0.0
    %67 = vmatpush1.msra.mxu0 0.0
    %68 = vmatprep.subr.mxu0 0.0
    %69 = vmatpush1.msra.mxu0 0.0
    %70 = vmatprep.subr.mxu0 0.0
    %71 = vmatpush1.msra.mxu0 0.0
    %72 = vmatprep.subr.mxu0 0.0
    %73 = vmatpush1.msra.mxu0 0.0
    %74 = vmatprep.subr.mxu0 0.0
    %75 = vmatpush1.msra.mxu0 0.0
    %76 = vmatprep.subr.mxu0 0.0
    %77 = vmatpush1.msra.mxu0 0.0
    %78 = vmatprep.subr.mxu0 0.0
    %79 = vmatpush1.msra.mxu0 0.0
    %80 = vmatprep.subr.mxu0 0.0
    %81 = vmatpush1.msra.mxu0 0.0
    %82 = vmatprep.subr.mxu0 0.0
    %83 = vmatpush1.msra.mxu0 0.0
    %84 = vmatprep.subr.mxu0 0.0
    %85 = vmatpush1.msra.mxu0 0.0
    %86 = vmatprep.subr.mxu0 0.0
    %87 = vmatpush1.msra.mxu0 0.0
    %88 = vmatprep.subr.mxu0 0.0
    %89 = vmatpush1.msra.mxu0 0.0
    %90 = vmatprep.subr.mxu0 0.0
    %91 = vmatpush1.msra.mxu0 0.0
    %92 = vmatprep.subr.mxu0 0.0
    %93 = vmatpush1.msra.mxu0 0.0
    %94 = vmatprep.subr.mxu0 0.0
    %95 = vmatpush1.msra.mxu0 0.0
    %96 = vmatprep.subr.mxu0 0.0
    %97 = vmatpush1.msra.mxu0 0.0
    %98 = vmatprep.subr.mxu0 0.0
    %99 = vmatpush1.msra.mxu0 0.0
    %100 = vmatprep.subr.mxu0 0.0
    %101 = vmatpush1.msra.mxu0 0.0
    %102 = vmatprep.subr.mxu0 0.0
    %103 = vmatpush1.msra.mxu0 0.0
    %104 = vmatprep.subr.mxu0 0.0
    %105 = vmatpush1.msra.mxu0 0.0
    %106 = vmatprep.subr.mxu0 0.0
    %107 = vmatpush1.msra.mxu0 0.0
    %108 = vmatprep.subr.mxu0 0.0
    %109 = vmatpush1.msra.mxu0 0.0
    %110 = vmatprep.subr.mxu0 0.0
    %111 = vmatpush1.msra.mxu0 0.0
    %112 = vmatprep.subr.mxu0 0.0
    %113 = vmatpush1.msra.mxu0 0.0
    %114 = vmatprep.subr.mxu0 0.0
    %115 = vmatpush1.msra.mxu0 0.0
    %116 = vmatprep.subr.mxu0 0.0
    %117 = vmatpush1.msra.mxu0 0.0
    %118 = vmatprep.subr.mxu0 0.0
    %119 = vmatpush1.msra.mxu0 0.0
    %120 = vmatprep.mubr.f32.mxu0 0.0
    %121 = vmatmul.mubr.f32.gmra.mrb[0].mxu0 %v49
    %v122 = vpop.f32.mrb[0].mxu0
    %v123 = vadd.f32 %v43, %v122
    %v124 = vpop.f32.mrb[0].mxu0
    %v125 = vadd.f32 %v43, %v124
    %126 = vdwg.mxu0
    %127 = vmatprep.subr.mxu0 %v125
    %128 = vmatpush1.xpose.msra.mxu0 %v123
    %129 = vmatprep.subr.mxu0 0.0
    %130 = vmatpush1.xpose.msra.mxu0 0.0
    %131 = vmatprep.subr.mxu0 0.0
    %132 = vmatpush1.xpose.msra.mxu0 0.0
    %133 = vmatprep.subr.mxu0 0.0
    %134 = vmatpush1.xpose.msra.mxu0 0.0
    %135 = vmatprep.subr.mxu0 0.0
    %136 = vmatpush1.xpose.msra.mxu0 0.0
    %137 = vmatprep.subr.mxu0 0.0
    %138 = vmatpush1.xpose.msra.mxu0 0.0
    %139 = vmatprep.subr.mxu0 0.0
    %140 = vmatpush1.xpose.msra.mxu0 0.0
    %141 = vmatprep.subr.mxu0 0.0
    %142 = vmatpush1.xpose.msra.mxu0 0.0
    %143 = vmatprep.subr.mxu0 0.0
    %144 = vmatpush1.xpose.msra.mxu0 0.0
    %145 = vmatprep.subr.mxu0 0.0
    %146 = vmatpush1.xpose.msra.mxu0 0.0
    %147 = vmatprep.subr.mxu0 0.0
    %148 = vmatpush1.xpose.msra.mxu0 0.0
    %149 = vmatprep.subr.mxu0 0.0
    %150 = vmatpush1.xpose.msra.mxu0 0.0
    %151 = vmatprep.subr.mxu0 0.0
    %152 = vmatpush1.xpose.msra.mxu0 0.0
    %153 = vmatprep.subr.mxu0 0.0
    %154 = vmatpush1.xpose.msra.mxu0 0.0
    %155 = vmatprep.subr.mxu0 0.0
    %156 = vmatpush1.xpose.msra.mxu0 0.0
    %157 = vmatprep.subr.mxu0 0.0
    %158 = vmatpush1.xpose.msra.mxu0 0.0
    %159 = vmatprep.subr.mxu0 0.0
    %160 = vmatpush1.xpose.msra.mxu0 0.0
    %161 = vmatprep.subr.mxu0 0.0
    %162 = vmatpush1.xpose.msra.mxu0 0.0
    %163 = vmatprep.subr.mxu0 0.0
    %164 = vmatpush1.xpose.msra.mxu0 0.0
    %165 = vmatprep.subr.mxu0 0.0
    %166 = vmatpush1.xpose.msra.mxu0 0.0
    %167 = vmatprep.subr.mxu0 0.0
    %168 = vmatpush1.xpose.msra.mxu0 0.0
    %169 = vmatprep.subr.mxu0 0.0
    %170 = vmatpush1.xpose.msra.mxu0 0.0
    %171 = vmatprep.subr.mxu0 0.0
    %172 = vmatpush1.xpose.msra.mxu0 0.0
    %173 = vmatprep.subr.mxu0 0.0
    %174 = vmatpush1.xpose.msra.mxu0 0.0
    %175 = vmatprep.subr.mxu0 0.0
    %176 = vmatpush1.xpose.msra.mxu0 0.0
    %177 = vmatprep.subr.mxu0 0.0
    %178 = vmatpush1.xpose.msra.mxu0 0.0
    %179 = vmatprep.subr.mxu0 0.0
    %180 = vmatpush1.xpose.msra.mxu0 0.0
    %181 = vmatprep.subr.mxu0 0.0
    %182 = vmatpush1.xpose.msra.mxu0 0.0
    %183 = vmatprep.subr.mxu0 0.0
    %184 = vmatpush1.xpose.msra.mxu0 0.0
    %185 = vmatprep.subr.mxu0 0.0
    %186 = vmatpush1.xpose.msra.mxu0 0.0
    %187 = vmatprep.subr.mxu0 0.0
    %188 = vmatpush1.xpose.msra.mxu0 0.0
    %189 = vmatprep.subr.mxu0 0.0
    %190 = vmatpush1.xpose.msra.mxu0 0.0
    %191 = vmatprep.mubr.f32.mxu0 %v125
    %192 = vmatmul.mubr.f32.gmra.mrb[0].mxu0 %v123
    %v193 = vpop.f32.mrb[0].mxu0
    %v194 = vadd.f32 0.0, %v193
    %v195 = vpop.f32.mrb[0].mxu0
    %196 = vdwg.mxu0
    %v197 = vmul.f32 %v194, 0.00390625
    %v198 = vlaneseq
    %v199 = vshrl.u32 %v198, 7
    %v200 = vsub.s32 2, %v199
    %v201 = vrot.slane %v197, %v200
    %203 = vrot.lane.b32.xlu0 %v201, 127
    %v204 = vpop.permute.xlu0 %203
    %v206 = vmul.f32 %v37, %v204
    %208 = vset.pattern.permute.xlu0 0
    %209 = vperm.xlu0 %208, %v206
    %v210 = vpop.permute.xlu0 %209
    %v212 = vlaneseq
    %v213 = vshrl.u32 %v212, 7
    %v214 = vsub.s32 0, %v213
    %v215 = vrot.slane %v123, %v214
    %v216 = vlaneseq
    %v217 = vshrl.u32 %v216, 7
    %v218 = vsub.s32 0, %v217
    %v219 = vrot.slane %v125, %v218
    %v220 = vmul.f32 %v210, %v215
    %v221 = vmul.f32 %v210, %v219
    %223 = vset.pattern.permute.xlu0 0
    %224 = vperm.xlu0 %223, %v38
    %v225 = vpop.permute.xlu0 %224
    %v227 = vadd.f32 %v220, %v225
    %v228 = vadd.f32 %v221, %v225
    %v230 = vadd.f32 %v227, %v39
    %v231 = vadd.f32 %v228, %v46
    %v234 = vcombine.low %v230, %v231
    %236 = vst [vmem:[#allocation5] sm:$0xff] %v234
    %s237 = scalar_lea.vmem [#allocation2], 8
    %v238 = vld [vmem:[%s237] sm:$0xff]
    %v240 = vcombine.high %v238, %v238
    %v241 = vsel %vm51, %v238, 0
    %v243 = vsel %vm51, %v240, 0
    %245 = vmatprep.subr.mxu0 %v243
    %246 = vmatpush1.msra.mxu0 %v241
    %247 = vmatprep.subr.mxu0 0.0
    %248 = vmatpush1.msra.mxu0 0.0
    %249 = vmatprep.subr.mxu0 0.0
    %250 = vmatpush1.msra.mxu0 0.0
    %251 = vmatprep.subr.mxu0 0.0
    %252 = vmatpush1.msra.mxu0 0.0
    %253 = vmatprep.subr.mxu0 0.0
    %254 = vmatpush1.msra.mxu0 0.0
    %255 = vmatprep.subr.mxu0 0.0
    %256 = vmatpush1.msra.mxu0 0.0
    %257 = vmatprep.subr.mxu0 0.0
    %258 = vmatpush1.msra.mxu0 0.0
    %259 = vmatprep.subr.mxu0 0.0
    %260 = vmatpush1.msra.mxu0 0.0
    %261 = vmatprep.subr.mxu0 0.0
    %262 = vmatpush1.msra.mxu0 0.0
    %263 = vmatprep.subr.mxu0 0.0
    %264 = vmatpush1.msra.mxu0 0.0
    %265 = vmatprep.subr.mxu0 0.0
    %266 = vmatpush1.msra.mxu0 0.0
    %267 = vmatprep.subr.mxu0 0.0
    %268 = vmatpush1.msra.mxu0 0.0
    %269 = vmatprep.subr.mxu0 0.0
    %270 = vmatpush1.msra.mxu0 0.0
    %271 = vmatprep.subr.mxu0 0.0
    %272 = vmatpush1.msra.mxu0 0.0
    %273 = vmatprep.subr.mxu0 0.0
    %274 = vmatpush1.msra.mxu0 0.0
    %275 = vmatprep.subr.mxu0 0.0
    %276 = vmatpush1.msra.mxu0 0.0
    %277 = vmatprep.subr.mxu0 0.0
    %278 = vmatpush1.msra.mxu0 0.0
    %279 = vmatprep.subr.mxu0 0.0
    %280 = vmatpush1.msra.mxu0 0.0
    %281 = vmatprep.subr.mxu0 0.0
    %282 = vmatpush1.msra.mxu0 0.0
    %283 = vmatprep.subr.mxu0 0.0
    %284 = vmatpush1.msra.mxu0 0.0
    %285 = vmatprep.subr.mxu0 0.0
    %286 = vmatpush1.msra.mxu0 0.0
    %287 = vmatprep.subr.mxu0 0.0
    %288 = vmatpush1.msra.mxu0 0.0
    %289 = vmatprep.subr.mxu0 0.0
    %290 = vmatpush1.msra.mxu0 0.0
    %291 = vmatprep.subr.mxu0 0.0
    %292 = vmatpush1.msra.mxu0 0.0
    %293 = vmatprep.subr.mxu0 0.0
    %294 = vmatpush1.msra.mxu0 0.0
    %295 = vmatprep.subr.mxu0 0.0
    %296 = vmatpush1.msra.mxu0 0.0
    %297 = vmatprep.subr.mxu0 0.0
    %298 = vmatpush1.msra.mxu0 0.0
    %299 = vmatprep.subr.mxu0 0.0
    %300 = vmatpush1.msra.mxu0 0.0
    %301 = vmatprep.subr.mxu0 0.0
    %302 = vmatpush1.msra.mxu0 0.0
    %303 = vmatprep.subr.mxu0 0.0
    %304 = vmatpush1.msra.mxu0 0.0
    %305 = vmatprep.subr.mxu0 0.0
    %306 = vmatpush1.msra.mxu0 0.0
    %307 = vmatprep.subr.mxu0 0.0
    %308 = vmatpush1.msra.mxu0 0.0
    %309 = vmatprep.mubr.f32.mxu0 0.0
    %310 = vmatmul.mubr.f32.gmra.mrb[0].mxu0 %v49
    %v311 = vpop.f32.mrb[0].mxu0
    %v312 = vadd.f32 %v43, %v311
    %v313 = vpop.f32.mrb[0].mxu0
    %v314 = vadd.f32 %v43, %v313
    %315 = vdwg.mxu0
    %316 = vmatprep.subr.mxu0 %v314
    %317 = vmatpush1.xpose.msra.mxu0 %v312
    %318 = vmatprep.subr.mxu0 0.0
    %319 = vmatpush1.xpose.msra.mxu0 0.0
    %320 = vmatprep.subr.mxu0 0.0
    %321 = vmatpush1.xpose.msra.mxu0 0.0
    %322 = vmatprep.subr.mxu0 0.0
    %323 = vmatpush1.xpose.msra.mxu0 0.0
    %324 = vmatprep.subr.mxu0 0.0
    %325 = vmatpush1.xpose.msra.mxu0 0.0
    %326 = vmatprep.subr.mxu0 0.0
    %327 = vmatpush1.xpose.msra.mxu0 0.0
    %328 = vmatprep.subr.mxu0 0.0
    %329 = vmatpush1.xpose.msra.mxu0 0.0
    %330 = vmatprep.subr.mxu0 0.0
    %331 = vmatpush1.xpose.msra.mxu0 0.0
    %332 = vmatprep.subr.mxu0 0.0
    %333 = vmatpush1.xpose.msra.mxu0 0.0
    %334 = vmatprep.subr.mxu0 0.0
    %335 = vmatpush1.xpose.msra.mxu0 0.0
    %336 = vmatprep.subr.mxu0 0.0
    %337 = vmatpush1.xpose.msra.mxu0 0.0
    %338 = vmatprep.subr.mxu0 0.0
    %339 = vmatpush1.xpose.msra.mxu0 0.0
    %340 = vmatprep.subr.mxu0 0.0
    %341 = vmatpush1.xpose.msra.mxu0 0.0
    %342 = vmatprep.subr.mxu0 0.0
    %343 = vmatpush1.xpose.msra.mxu0 0.0
    %344 = vmatprep.subr.mxu0 0.0
    %345 = vmatpush1.xpose.msra.mxu0 0.0
    %346 = vmatprep.subr.mxu0 0.0
    %347 = vmatpush1.xpose.msra.mxu0 0.0
    %348 = vmatprep.subr.mxu0 0.0
    %349 = vmatpush1.xpose.msra.mxu0 0.0
    %350 = vmatprep.subr.mxu0 0.0
    %351 = vmatpush1.xpose.msra.mxu0 0.0
    %352 = vmatprep.subr.mxu0 0.0
    %353 = vmatpush1.xpose.msra.mxu0 0.0
    %354 = vmatprep.subr.mxu0 0.0
    %355 = vmatpush1.xpose.msra.mxu0 0.0
    %356 = vmatprep.subr.mxu0 0.0
    %357 = vmatpush1.xpose.msra.mxu0 0.0
    %358 = vmatprep.subr.mxu0 0.0
    %359 = vmatpush1.xpose.msra.mxu0 0.0
    %360 = vmatprep.subr.mxu0 0.0
    %361 = vmatpush1.xpose.msra.mxu0 0.0
    %362 = vmatprep.subr.mxu0 0.0
    %363 = vmatpush1.xpose.msra.mxu0 0.0
    %364 = vmatprep.subr.mxu0 0.0
    %365 = vmatpush1.xpose.msra.mxu0 0.0
    %366 = vmatprep.subr.mxu0 0.0
    %367 = vmatpush1.xpose.msra.mxu0 0.0
    %368 = vmatprep.subr.mxu0 0.0
    %369 = vmatpush1.xpose.msra.mxu0 0.0
    %370 = vmatprep.subr.mxu0 0.0
    %371 = vmatpush1.xpose.msra.mxu0 0.0
    %372 = vmatprep.subr.mxu0 0.0
    %373 = vmatpush1.xpose.msra.mxu0 0.0
    %374 = vmatprep.subr.mxu0 0.0
    %375 = vmatpush1.xpose.msra.mxu0 0.0
    %376 = vmatprep.subr.mxu0 0.0
    %377 = vmatpush1.xpose.msra.mxu0 0.0
    %378 = vmatprep.subr.mxu0 0.0
    %379 = vmatpush1.xpose.msra.mxu0 0.0
    %380 = vmatprep.mubr.f32.mxu0 %v314
    %381 = vmatmul.mubr.f32.gmra.mrb[0].mxu0 %v312
    %v382 = vpop.f32.mrb[0].mxu0
    %v383 = vadd.f32 0.0, %v382
    %v384 = vpop.f32.mrb[0].mxu0
    %385 = vdwg.mxu0
    %v386 = vmul.f32 %v383, 0.00390625
    %v387 = vlaneseq
    %v388 = vshrl.u32 %v387, 7
    %v389 = vsub.s32 2, %v388
    %v390 = vrot.slane %v386, %v389
    %392 = vrot.lane.b32.xlu0 %v390, 127
    %v393 = vpop.permute.xlu0 %392
    %v395 = vmul.f32 %v37, %v393
    %397 = vset.pattern.permute.xlu0 0
    %398 = vperm.xlu0 %397, %v395
    %v399 = vpop.permute.xlu0 %398
    %v401 = vlaneseq
    %v402 = vshrl.u32 %v401, 7
    %v403 = vsub.s32 0, %v402
    %v404 = vrot.slane %v312, %v403
    %v405 = vlaneseq
    %v406 = vshrl.u32 %v405, 7
    %v407 = vsub.s32 0, %v406
    %v408 = vrot.slane %v314, %v407
    %v409 = vmul.f32 %v399, %v404
    %v410 = vmul.f32 %v399, %v408
    %v411 = vadd.f32 %v409, %v225
    %v412 = vadd.f32 %v410, %v225
    %v414 = vadd.f32 %v411, %v238
    %v415 = vadd.f32 %v412, %v240
    %v418 = vcombine.low %v414, %v415
    %s420 = scalar_lea.vmem [#allocation5], 8
    %421 = vst [vmem:[%s420] sm:$0xff] %v418
    // Predicated region
    $region26: #{tpu_custom_call.1} parent=1 // pred_check
      _
    $region27: #{tpu_custom_call.1} parent=1 // pred_check_branch
      %423 = sbr.rel (0) target = $region29
    $region28: #{tpu_custom_call.1} parent=1 // pred_region
      %s425 = ssub.s32 256, 256
      %426 = vsyncadd [#allocation4], %s425
      %s427 = sshll.u32 [#allocation5], 4
      %s428 = int_to_ptr.vmem [resolvable:$true] %s427
      %433 = dma.vmem_to_hbm [thread:$0]  %s428, 256, %s5, [#allocation4], 128, 128, 8
    $region29: #{tpu_custom_call.1} parent=1 // pred_fallthru
      _
    // Predicated region
    $region30: #{tpu_custom_call.1} parent=1 // pred_check
      _
    $region31: #{tpu_custom_call.1} parent=1 // pred_check_branch
      %435 = sbr.rel (0) target = $region33
    $region32: #{tpu_custom_call.1} parent=1 // pred_region
      %436 = dma.done [#allocation4], 256
    $region33: #{tpu_custom_call.1} parent=1 // pred_fallthru
      _
    %437 = vsyncpa [#allocation3], 1
    %438 = vsyncpa [#allocation4], 1

</llo_original>
